<compile_context>
chip_gen: v7x
topology: tpu7x:2x2x1
jax: 0.10.0
libtpu: 0.0.40
codegen_flags: <defaults>
</compile_context>

<pallas_src>
import jax
import jax.numpy as jnp
from jax.experimental import pallas as pl
from jax.experimental.pallas import tpu as pltpu

HIDDEN = 128
HEAD_PAD = 128          # lane-dense padded action-head width used for compute
NEG_INF = -1e30         # bias for padded action columns (softmax -> 0)
CLAMP_LO = 1e-6
CLAMP_HI = 1.0 - 1e-6


def _actor_kernel(x_ref, w1_ref, b1_ref, w3_ref, b3_ref, w5_ref, b5_ref,
                  wh_ref, bh_ref, out_ref):
    # Dropout layers = identity (eval mode).
    x = x_ref[...].astype(jnp.bfloat16)

    # fc1 + ReLU  (bf16 MXU, f32 accumulate, f32 elementwise)
    h = jnp.dot(x, w1_ref[...], preferred_element_type=jnp.float32) + b1_ref[...]
    h = jnp.maximum(h, 0.0)

    # fc3 + ReLU
    h = jnp.dot(h.astype(jnp.bfloat16), w3_ref[...],
                preferred_element_type=jnp.float32) + b3_ref[...]
    h = jnp.maximum(h, 0.0)

    # fc5 + ReLU
    h = jnp.dot(h.astype(jnp.bfloat16), w5_ref[...],
                preferred_element_type=jnp.float32) + b5_ref[...]
    h = jnp.maximum(h, 0.0)

    # action_head on the HEAD_PAD-wide (lane-dense) padded head.
    # Pad columns carry bias = -1e30, so they contribute exp(...) == 0.
    logits = jnp.dot(h.astype(jnp.bfloat16), wh_ref[...],
                     preferred_element_type=jnp.float32) + bh_ref[...]

    # Numerically stable softmax over the last axis (exact reciprocal: EUP/VPU
    # have plenty of slack in this DMA-bound kernel, and exactness matters for
    # downstream PPO log-prob ratios).
    m = jnp.max(logits, axis=-1, keepdims=True)
    e = jnp.exp(logits - m)
    denom = jnp.sum(e, axis=-1, keepdims=True)
    probs = e / denom

    # Compact store: only the real n_out action columns go back to HBM.
    n_out = out_ref.shape[-1]
    out_ref[...] = jnp.clip(probs[:, :n_out], CLAMP_LO, CLAMP_HI).astype(out_ref.dtype)


def _round_up(x, m):
    return ((x + m - 1) // m) * m


def actor_forward(x, params, *, tile_b=2048):
    """x: [B, n_in] float32 (or bfloat16). params from init_params(). -> [B, n_out] f32."""
    B, n_in = x.shape
    n_out = int(params["n_out"])
    hid = params["w1"].shape[1]
    hpad = params["wh_pad"].shape[1]

    # Batch tile: multiple of 8 (sublane), large by default (amortizes the
    # ~0.35us per-grid-step overhead), but capped at ~half the rounded batch so
    # large batches still give >= 2 grid steps (v7x: one per TensorCore).
    b8 = _round_up(B, 8)
    half = max(8, _round_up((b8 + 1) // 2, 8))
    tb = max(8, min(int(tile_b), half))
    b_pad = pl.cdiv(B, tb) * tb
    if b_pad != B:
        x = jnp.pad(x, ((0, b_pad - B), (0, 0)))

    def const(shape):
        # Constant index_map: weight/bias tiles DMA'd once, resident in VMEM.
        return pl.BlockSpec(shape, lambda i: (0, 0))

    in_specs = [
        pl.BlockSpec((tb, n_in), lambda i: (i, 0)),   # x tile (batch-tiled)
        const((n_in, hid)), const((1, hid)),          # fc1
        const((hid, hid)),  const((1, hid)),          # fc3
        const((hid, hid)),  const((1, hid)),          # fc5
        const((hid, hpad)), const((1, hpad)),         # action_head (padded)
    ]

    # Cost estimate: this kernel is HBM-bound; give XLA an honest picture.
    weight_bytes = (n_in * hid + 2 * hid * hid + hid * hpad) * 2 \
        + (3 * hid + hpad) * 4
    x_bytes = b_pad * n_in * x.dtype.itemsize
    out_bytes = b_pad * n_out * 4
    cost = pl.CostEstimate(
        flops=2 * b_pad * (n_in * hid + 2 * hid * hid + hid * hpad),
        transcendentals=b_pad * hpad,
        bytes_accessed=x_bytes + out_bytes + weight_bytes,
    )

    # Only raise the scoped VMEM limit when an aggressively tuned tile_b would
    # actually need it (keeps defaults on v7x's smaller 64 MiB VMEM safe).
    compiler_kwargs = dict(dimension_semantics=("parallel",))
    vmem_est = 2 * tb * (n_in * x.dtype.itemsize + n_out * 4) \
        + 2 * weight_bytes + (2 << 20)
    if vmem_est > (16 << 20):
        compiler_kwargs["vmem_limit_bytes"] = int(min(2 * vmem_est, 64 << 20))

    out = pl.pallas_call(
        _actor_kernel,
        out_shape=jax.ShapeDtypeStruct((b_pad, n_out), jnp.float32),
        grid_spec=pltpu.PrefetchScalarGridSpec(
            num_scalar_prefetch=0,
            grid=(b_pad // tb,),
            in_specs=in_specs,
            # Compact output: last dim equals the full array dim -> legal block.
            out_specs=pl.BlockSpec((tb, n_out), lambda i: (i, 0)),
        ),
        compiler_params=pltpu.CompilerParams(**compiler_kwargs),
        cost_estimate=cost,
    )(x,
      params["w1"], params["b1"],
      params["w3"], params["b3"],
      params["w5"], params["b5"],
      params["wh_pad"], params["bh_pad"])

    return out[:B] if b_pad != B else out


def init_params(key, number_of_inputs, number_of_outputs,
                hidden=HIDDEN, head_pad=HEAD_PAD):
    """Deterministic synthetic init (uniform, roughly PyTorch Linear scale).

    Weights are stored transposed vs. PyTorch as (in_features, out_features)
    and cast to bf16 for the MXU; biases stay f32.  The action head is padded
    to `head_pad` columns: pad weight columns are 0 and pad biases are -1e30
    so the padded logits vanish under softmax (the kernel never stores them).
    """
    def linear(k, fan_in, fan_out):
        kw, kb = jax.random.split(k)
        bound = 1.0 / (fan_in ** 0.5)
        w = jax.random.uniform(kw, (fan_in, fan_out), jnp.float32, -bound, bound)
        b = jax.random.uniform(kb, (1, fan_out), jnp.float32, -bound, bound)
        return w, b

    k1, k3, k5, kh = jax.random.split(key, 4)
    w1, b1 = linear(k1, number_of_inputs, hidden)
    w3, b3 = linear(k3, hidden, hidden)
    w5, b5 = linear(k5, hidden, hidden)
    wh, bh = linear(kh, hidden, number_of_outputs)

    pad = head_pad - number_of_outputs
    wh_pad = jnp.pad(wh, ((0, 0), (0, pad)))
    bh_pad = jnp.pad(bh, ((0, 0), (0, pad)), constant_values=NEG_INF)

    return {
        "w1": w1.astype(jnp.bfloat16), "b1": b1,
        "w3": w3.astype(jnp.bfloat16), "b3": b3,
        "w5": w5.astype(jnp.bfloat16), "b5": b5,
        "wh_pad": wh_pad.astype(jnp.bfloat16), "bh_pad": bh_pad,
        "n_out": number_of_outputs,
    }


if __name__ == "__main__":
    number_of_inputs = 32    # observation dim
    number_of_outputs = 4    # discrete actions (4-wheel robot)
    batch = 2                # small demo batch; production uses large rollouts

    key = jax.random.PRNGKey(0)
    kx, kp = jax.random.split(key)
    x = jax.random.normal(kx, (batch, number_of_inputs), jnp.float32)
    params = init_params(kp, number_of_inputs, number_of_outputs)

    probs = actor_forward(x, params)
    jax.block_until_ready(probs)

    # sanity: valid probability rows, respecting the clamp
    assert probs.shape == (batch, number_of_outputs)
    assert bool(jnp.all(probs >= CLAMP_LO)) and bool(jnp.all(probs <= CLAMP_HI))
    # exact softmax + clamp => rows sum to 1 within float error
    assert bool(jnp.all(jnp.abs(jnp.sum(probs, axis=1) - 1.0) < 1e-4))

    print("KERNEL_OK")
</pallas_src>

<mosaic_0001>
module attributes {stable_mosaic.version = 11 : i64} {
  func.func @_actor_kernel(%arg0: i32, %arg1: memref<8x32xf32, #tpu.memory_space<vmem>>, %arg2: memref<32x128xbf16, #tpu.memory_space<vmem>>, %arg3: memref<1x128xf32, #tpu.memory_space<vmem>>, %arg4: memref<128x128xbf16, #tpu.memory_space<vmem>>, %arg5: memref<1x128xf32, #tpu.memory_space<vmem>>, %arg6: memref<128x128xbf16, #tpu.memory_space<vmem>>, %arg7: memref<1x128xf32, #tpu.memory_space<vmem>>, %arg8: memref<128x128xbf16, #tpu.memory_space<vmem>>, %arg9: memref<1x128xf32, #tpu.memory_space<vmem>>, %arg10: memref<8x4xf32, #tpu.memory_space<vmem>>) attributes {dimension_semantics = [#tpu.dimension_semantics<parallel>], iteration_bounds = array<i64: 1>, scalar_prefetch = 0 : i64, scratch_operands = 0 : i64, tpu.core_type = #tpu.core_type<tc>, window_params = [{transform_indices = @transform_0, window_bounds = array<i64: 8, 32>}, {pipeline_mode = #tpu.pipeline_mode<synchronous>, transform_indices = @transform_1, window_bounds = array<i64: 32, 128>}, {pipeline_mode = #tpu.pipeline_mode<synchronous>, transform_indices = @transform_2, window_bounds = array<i64: 1, 128>}, {pipeline_mode = #tpu.pipeline_mode<synchronous>, transform_indices = @transform_3, window_bounds = array<i64: 128, 128>}, {pipeline_mode = #tpu.pipeline_mode<synchronous>, transform_indices = @transform_4, window_bounds = array<i64: 1, 128>}, {pipeline_mode = #tpu.pipeline_mode<synchronous>, transform_indices = @transform_5, window_bounds = array<i64: 128, 128>}, {pipeline_mode = #tpu.pipeline_mode<synchronous>, transform_indices = @transform_6, window_bounds = array<i64: 1, 128>}, {pipeline_mode = #tpu.pipeline_mode<synchronous>, transform_indices = @transform_7, window_bounds = array<i64: 128, 128>}, {pipeline_mode = #tpu.pipeline_mode<synchronous>, transform_indices = @transform_8, window_bounds = array<i64: 1, 128>}, {transform_indices = @transform_9, window_bounds = array<i64: 8, 4>}]} {
    %c0 = arith.constant 0 : index
    %c0_0 = arith.constant 0 : index
    %0 = vector.load %arg1[%c0, %c0_0] : memref<8x32xf32, #tpu.memory_space<vmem>>, vector<8x32xf32>
    %1 = arith.truncf %0 : vector<8x32xf32> to vector<8x32xbf16>
    %c0_1 = arith.constant 0 : index
    %c0_2 = arith.constant 0 : index
    %2 = vector.load %arg2[%c0_1, %c0_2] : memref<32x128xbf16, #tpu.memory_space<vmem>>, vector<32x128xbf16>
    %cst = arith.constant dense<0.000000e+00> : vector<8x128xf32>
    %3 = tpu.matmul %1, %2, %cst {dimension_numbers = #tpu.dot_dimension_numbers<[1], [0], [0], [1], [0, 0, 1, 1], [], []>} : vector<8x32xbf16>, vector<32x128xbf16>, vector<8x128xf32> -> vector<8x128xf32>
    %c0_3 = arith.constant 0 : index
    %c0_4 = arith.constant 0 : index
    %4 = vector.load %arg3[%c0_3, %c0_4] : memref<1x128xf32, #tpu.memory_space<vmem>>, vector<1x128xf32>
    %5 = vector.broadcast %4 : vector<1x128xf32> to vector<8x128xf32>
    %6 = arith.addf %3, %5 : vector<8x128xf32>
    %cst_5 = arith.constant 0.000000e+00 : f32
    %7 = vector.broadcast %cst_5 : f32 to vector<8x128xf32>
    %8 = arith.maximumf %6, %7 : vector<8x128xf32>
    %9 = arith.truncf %8 : vector<8x128xf32> to vector<8x128xbf16>
    %c0_6 = arith.constant 0 : index
    %c0_7 = arith.constant 0 : index
    %10 = vector.load %arg4[%c0_6, %c0_7] : memref<128x128xbf16, #tpu.memory_space<vmem>>, vector<128x128xbf16>
    %cst_8 = arith.constant dense<0.000000e+00> : vector<8x128xf32>
    %11 = tpu.matmul %9, %10, %cst_8 {dimension_numbers = #tpu.dot_dimension_numbers<[1], [0], [0], [1], [0, 0, 1, 1], [], []>} : vector<8x128xbf16>, vector<128x128xbf16>, vector<8x128xf32> -> vector<8x128xf32>
    %c0_9 = arith.constant 0 : index
    %c0_10 = arith.constant 0 : index
    %12 = vector.load %arg5[%c0_9, %c0_10] : memref<1x128xf32, #tpu.memory_space<vmem>>, vector<1x128xf32>
    %13 = vector.broadcast %12 : vector<1x128xf32> to vector<8x128xf32>
    %14 = arith.addf %11, %13 : vector<8x128xf32>
    %cst_11 = arith.constant 0.000000e+00 : f32
    %15 = vector.broadcast %cst_11 : f32 to vector<8x128xf32>
    %16 = arith.maximumf %14, %15 : vector<8x128xf32>
    %17 = arith.truncf %16 : vector<8x128xf32> to vector<8x128xbf16>
    %c0_12 = arith.constant 0 : index
    %c0_13 = arith.constant 0 : index
    %18 = vector.load %arg6[%c0_12, %c0_13] : memref<128x128xbf16, #tpu.memory_space<vmem>>, vector<128x128xbf16>
    %cst_14 = arith.constant dense<0.000000e+00> : vector<8x128xf32>
    %19 = tpu.matmul %17, %18, %cst_14 {dimension_numbers = #tpu.dot_dimension_numbers<[1], [0], [0], [1], [0, 0, 1, 1], [], []>} : vector<8x128xbf16>, vector<128x128xbf16>, vector<8x128xf32> -> vector<8x128xf32>
    %c0_15 = arith.constant 0 : index
    %c0_16 = arith.constant 0 : index
    %20 = vector.load %arg7[%c0_15, %c0_16] : memref<1x128xf32, #tpu.memory_space<vmem>>, vector<1x128xf32>
    %21 = vector.broadcast %20 : vector<1x128xf32> to vector<8x128xf32>
    %22 = arith.addf %19, %21 : vector<8x128xf32>
    %cst_17 = arith.constant 0.000000e+00 : f32
    %23 = vector.broadcast %cst_17 : f32 to vector<8x128xf32>
    %24 = arith.maximumf %22, %23 : vector<8x128xf32>
    %25 = arith.truncf %24 : vector<8x128xf32> to vector<8x128xbf16>
    %c0_18 = arith.constant 0 : index
    %c0_19 = arith.constant 0 : index
    %26 = vector.load %arg8[%c0_18, %c0_19] : memref<128x128xbf16, #tpu.memory_space<vmem>>, vector<128x128xbf16>
    %cst_20 = arith.constant dense<0.000000e+00> : vector<8x128xf32>
    %27 = tpu.matmul %25, %26, %cst_20 {dimension_numbers = #tpu.dot_dimension_numbers<[1], [0], [0], [1], [0, 0, 1, 1], [], []>} : vector<8x128xbf16>, vector<128x128xbf16>, vector<8x128xf32> -> vector<8x128xf32>
    %c0_21 = arith.constant 0 : index
    %c0_22 = arith.constant 0 : index
    %28 = vector.load %arg9[%c0_21, %c0_22] : memref<1x128xf32, #tpu.memory_space<vmem>>, vector<1x128xf32>
    %29 = vector.broadcast %28 : vector<1x128xf32> to vector<8x128xf32>
    %30 = arith.addf %27, %29 : vector<8x128xf32>
    %cst_23 = arith.constant dense<0xFF800000> : vector<8xf32>
    %31 = vector.multi_reduction <maximumf>, %30, %cst_23 [1] : vector<8x128xf32> to vector<8xf32>
    %32 = vector.shape_cast %31 : vector<8xf32> to vector<8x1xf32>
    %33 = vector.broadcast %32 : vector<8x1xf32> to vector<8x128xf32>
    %34 = arith.subf %30, %33 : vector<8x128xf32>
    %35 = math.exp %34 : vector<8x128xf32>
    %cst_24 = arith.constant dense<0.000000e+00> : vector<8xf32>
    %36 = vector.multi_reduction <add>, %35, %cst_24 [1] : vector<8x128xf32> to vector<8xf32>
    %37 = vector.shape_cast %36 : vector<8xf32> to vector<8x1xf32>
    %38 = vector.broadcast %37 : vector<8x1xf32> to vector<8x128xf32>
    %39 = arith.divf %35, %38 : vector<8x128xf32>
    %40 = vector.extract_strided_slice %39 {offsets = [0, 0], sizes = [8, 4], strides = [1, 1]} : vector<8x128xf32> to vector<8x4xf32>
    %cst_25 = arith.constant 9.99999997E-7 : f32
    %cst_26 = arith.constant 0.999998986 : f32
    %41 = vector.broadcast %cst_25 : f32 to vector<8x4xf32>
    %42 = arith.maximumf %41, %40 : vector<8x4xf32>
    %43 = vector.broadcast %cst_26 : f32 to vector<8x4xf32>
    %44 = arith.minimumf %43, %42 : vector<8x4xf32>
    %c0_27 = arith.constant 0 : index
    %c0_28 = arith.constant 0 : index
    %45 = vector.load %arg10[%c0_27, %c0_28] : memref<8x4xf32, #tpu.memory_space<vmem>>, vector<8x4xf32>
    tpu.vector_store %arg10[%c0_27, %c0_28], %44 {strides = array<i32>} : memref<8x4xf32, #tpu.memory_space<vmem>>, vector<8x4xf32>,
    return
  }
  func.func @transform_0(%arg0: i32) -> (i32, i32) {
    %c0_i32 = arith.constant 0 : i32
    %c0_i32_0 = arith.constant 0 : i32
    return %arg0, %c0_i32 : i32, i32
  }
  func.func @transform_1(%arg0: i32) -> (i32, i32) {
    %c0_i32 = arith.constant 0 : i32
    %c0_i32_0 = arith.constant 0 : i32
    %c0_i32_1 = arith.constant 0 : i32
    return %c0_i32, %c0_i32_0 : i32, i32
  }
  func.func @transform_2(%arg0: i32) -> (i32, i32) {
    %c0_i32 = arith.constant 0 : i32
    %c0_i32_0 = arith.constant 0 : i32
    %c0_i32_1 = arith.constant 0 : i32
    return %c0_i32, %c0_i32_0 : i32, i32
  }
  func.func @transform_3(%arg0: i32) -> (i32, i32) {
    %c0_i32 = arith.constant 0 : i32
    %c0_i32_0 = arith.constant 0 : i32
    %c0_i32_1 = arith.constant 0 : i32
    return %c0_i32, %c0_i32_0 : i32, i32
  }
  func.func @transform_4(%arg0: i32) -> (i32, i32) {
    %c0_i32 = arith.constant 0 : i32
    %c0_i32_0 = arith.constant 0 : i32
    %c0_i32_1 = arith.constant 0 : i32
    return %c0_i32, %c0_i32_0 : i32, i32
  }
  func.func @transform_5(%arg0: i32) -> (i32, i32) {
    %c0_i32 = arith.constant 0 : i32
    %c0_i32_0 = arith.constant 0 : i32
    %c0_i32_1 = arith.constant 0 : i32
    return %c0_i32, %c0_i32_0 : i32, i32
  }
  func.func @transform_6(%arg0: i32) -> (i32, i32) {
    %c0_i32 = arith.constant 0 : i32
    %c0_i32_0 = arith.constant 0 : i32
    %c0_i32_1 = arith.constant 0 : i32
    return %c0_i32, %c0_i32_0 : i32, i32
  }
  func.func @transform_7(%arg0: i32) -> (i32, i32) {
    %c0_i32 = arith.constant 0 : i32
    %c0_i32_0 = arith.constant 0 : i32
    %c0_i32_1 = arith.constant 0 : i32
    return %c0_i32, %c0_i32_0 : i32, i32
  }
  func.func @transform_8(%arg0: i32) -> (i32, i32) {
    %c0_i32 = arith.constant 0 : i32
    %c0_i32_0 = arith.constant 0 : i32
    %c0_i32_1 = arith.constant 0 : i32
    return %c0_i32, %c0_i32_0 : i32, i32
  }
  func.func @transform_9(%arg0: i32) -> (i32, i32) {
    %c0_i32 = arith.constant 0 : i32
    %c0_i32_0 = arith.constant 0 : i32
    return %arg0, %c0_i32 : i32, i32
  }
}

</mosaic_0001>

<llo_original>
// kernel: tpu_custom_call.1
$region0: #{tpu_custom_call.1}
  #allocation0 [shape = 'u32[]', space=smem, size = 0x4, offset = 0x4, fixed_abs, tag = 'smem constant byte address 0x4 - core index']
  #allocation1 [shape = 'u32[144,128]{1,0:T(1,128)}', space=vmem, size = 0x12000, scoped, tag = 'internal scratch']
  %s0 = inlined_call_operand.hbm [shape: f32[8,32], index: 0, kind: input, shape index: {}]
  %s1 = inlined_call_operand.hbm [shape: bf16[32,128], index: 1, kind: input, shape index: {}]
  %s2 = inlined_call_operand.vmem [shape: f32[1,128], index: 2, kind: input, shape index: {}]
  %s3 = inlined_call_operand.hbm [shape: bf16[128,128], index: 3, kind: input, shape index: {}]
  %s4 = inlined_call_operand.vmem [shape: f32[1,128], index: 4, kind: input, shape index: {}]
  %s5 = inlined_call_operand.hbm [shape: bf16[128,128], index: 5, kind: input, shape index: {}]
  %s6 = inlined_call_operand.vmem [shape: f32[1,128], index: 6, kind: input, shape index: {}]
  %s7 = inlined_call_operand.hbm [shape: bf16[128,128], index: 7, kind: input, shape index: {}]
  %s8 = inlined_call_operand.vmem [shape: f32[1,128], index: 8, kind: input, shape index: {}]
  %s9 = inlined_call_operand.vmem [shape: f32[8,4], index: 9, kind: output, shape index: {}]
  %s10 = sld [smem:[#allocation0]]
  $region66: #{tpu_custom_call.1} parent=0
    _
  %s12 = ssub.s32 1, %s10
  %s13 = scalar_select 0, %s12, %s10
  $region1: #{tpu_custom_call.1} parent=0
    #allocation2 [shape = 'u8[4096]{0}', space=vmem, size = 0x1000, scoped, tag = 'input window, operand 0, single buffered']
    #allocation3 [shape = 's32[1]{0}', space=sflag, size = 0x4, scoped, tag = 'scoped memory for tpu_custom_call.1']
    #allocation4 [shape = 'u8[8192]{0}', space=vmem, size = 0x2000, scoped, tag = 'input window, operand 1, single buffered']
    #allocation5 [shape = 's32[1]{0}', space=sflag, size = 0x4, scoped, tag = 'scoped memory for tpu_custom_call.1']
    #allocation6 [shape = 'u8[32768]{0}', space=vmem, size = 0x8000, scoped, tag = 'input window, operand 3, single buffered']
    #allocation7 [shape = 'u8[32768]{0}', space=vmem, size = 0x8000, scoped, tag = 'input window, operand 5, single buffered']
    #allocation8 [shape = 's32[1]{0}', space=sflag, size = 0x4, scoped, tag = 'scoped memory for tpu_custom_call.1']
    #allocation9 [shape = 'u8[32768]{0}', space=vmem, size = 0x8000, scoped, tag = 'input window, operand 7, single buffered']
    %14 = vsyncpa [#allocation3], 0
    %15 = vsyncpa [#allocation5], 0
    %16 = vsyncpa [#allocation8], 0
    // Predicated region
    $region2: #{tpu_custom_call.1} parent=1 // pred_check
      _
    $region3: #{tpu_custom_call.1} parent=1 // pred_check_branch
      %18 = sbr.rel (0) target = $region5
    $region4: #{tpu_custom_call.1} parent=1 // pred_region
      %s20 = ssub.s32 128, 128
      %21 = vsyncadd [#allocation3], %s20
      %s23 = sshll.u32 [#allocation2], 4
      %s24 = int_to_ptr.vmem [resolvable:$true] %s23
      %26 = dma.hbm_to_vmem [thread:$0]  %s0, 128, %s24, [#allocation3]
    $region5: #{tpu_custom_call.1} parent=1 // pred_fallthru
      _
    // Predicated region
    $region6: #{tpu_custom_call.1} parent=1 // pred_check
      _
    $region7: #{tpu_custom_call.1} parent=1 // pred_check_branch
      %28 = sbr.rel (0) target = $region9
    $region8: #{tpu_custom_call.1} parent=1 // pred_region
      %s30 = ssub.s32 256, 256
      %31 = vsyncadd [#allocation5], %s30
      %s32 = sshll.u32 [#allocation4], 4
      %s33 = int_to_ptr.vmem [resolvable:$true] %s32
      %38 = dma.hbm_to_vmem [thread:$0]  %s1, 256, %s33, [#allocation5], 64, 64, 4
    $region9: #{tpu_custom_call.1} parent=1 // pred_fallthru
      _
    // Predicated region
    $region10: #{tpu_custom_call.1} parent=1 // pred_check
      _
    $region11: #{tpu_custom_call.1} parent=1 // pred_check_branch
      %40 = sbr.rel (0) target = $region13
    $region12: #{tpu_custom_call.1} parent=1 // pred_region
      _
    $region13: #{tpu_custom_call.1} parent=1 // pred_fallthru
      _
    // Predicated region
    $region14: #{tpu_custom_call.1} parent=1 // pred_check
      _
    $region15: #{tpu_custom_call.1} parent=1 // pred_check_branch
      %42 = sbr.rel (0) target = $region17
    $region16: #{tpu_custom_call.1} parent=1 // pred_region
      %s44 = ssub.s32 1024, 1024
      %45 = vsyncadd [#allocation5], %s44
      %s46 = sshll.u32 [#allocation6], 4
      %s47 = int_to_ptr.vmem [resolvable:$true] %s46
      %52 = dma.hbm_to_vmem [thread:$0]  %s3, 1024, %s47, [#allocation5], 64, 64, 4
    $region17: #{tpu_custom_call.1} parent=1 // pred_fallthru
      _
    // Predicated region
    $region18: #{tpu_custom_call.1} parent=1 // pred_check
      _
    $region19: #{tpu_custom_call.1} parent=1 // pred_check_branch
      %54 = sbr.rel (0) target = $region21
    $region20: #{tpu_custom_call.1} parent=1 // pred_region
      _
    $region21: #{tpu_custom_call.1} parent=1 // pred_fallthru
      _
    // Predicated region
    $region22: #{tpu_custom_call.1} parent=1 // pred_check
      _
    $region23: #{tpu_custom_call.1} parent=1 // pred_check_branch
      %56 = sbr.rel (0) target = $region25
    $region24: #{tpu_custom_call.1} parent=1 // pred_region
      %s58 = ssub.s32 1024, 1024
      %59 = vsyncadd [#allocation8], %s58
      %s60 = sshll.u32 [#allocation7], 4
      %s61 = int_to_ptr.vmem [resolvable:$true] %s60
      %66 = dma.hbm_to_vmem [thread:$0]  %s5, 1024, %s61, [#allocation8], 64, 64, 4
    $region25: #{tpu_custom_call.1} parent=1 // pred_fallthru
      _
    // Predicated region
    $region26: #{tpu_custom_call.1} parent=1 // pred_check
      _
    $region27: #{tpu_custom_call.1} parent=1 // pred_check_branch
      %68 = sbr.rel (0) target = $region29
    $region28: #{tpu_custom_call.1} parent=1 // pred_region
      _
    $region29: #{tpu_custom_call.1} parent=1 // pred_fallthru
      _
    // Predicated region
    $region30: #{tpu_custom_call.1} parent=1 // pred_check
      _
    $region31: #{tpu_custom_call.1} parent=1 // pred_check_branch
      %70 = sbr.rel (0) target = $region33
    $region32: #{tpu_custom_call.1} parent=1 // pred_region
      %s72 = ssub.s32 1024, 1024
      %73 = vsyncadd [#allocation8], %s72
      %s74 = sshll.u32 [#allocation9], 4
      %s75 = int_to_ptr.vmem [resolvable:$true] %s74
      %80 = dma.hbm_to_vmem [thread:$0]  %s7, 1024, %s75, [#allocation8], 64, 64, 4
    $region33: #{tpu_custom_call.1} parent=1 // pred_fallthru
      _
    // Predicated region
    $region34: #{tpu_custom_call.1} parent=1 // pred_check
      _
    $region35: #{tpu_custom_call.1} parent=1 // pred_check_branch
      %82 = sbr.rel (0) target = $region37
    $region36: #{tpu_custom_call.1} parent=1 // pred_region
      _
    $region37: #{tpu_custom_call.1} parent=1 // pred_fallthru
      _
    // Predicated region
    $region38: #{tpu_custom_call.1} parent=1 // pred_check
      _
    $region39: #{tpu_custom_call.1} parent=1 // pred_check_branch
      %84 = sbr.rel (0) target = $region41
    $region40: #{tpu_custom_call.1} parent=1 // pred_region
      %85 = dma.done [#allocation3], 128
    $region41: #{tpu_custom_call.1} parent=1 // pred_fallthru
      _
    // Predicated region
    $region42: #{tpu_custom_call.1} parent=1 // pred_check
      _
    $region43: #{tpu_custom_call.1} parent=1 // pred_check_branch
      %87 = sbr.rel (0) target = $region45
    $region44: #{tpu_custom_call.1} parent=1 // pred_region
      %88 = dma.done [#allocation5], 256
    $region45: #{tpu_custom_call.1} parent=1 // pred_fallthru
      _
    // Predicated region
    $region46: #{tpu_custom_call.1} parent=1 // pred_check
      _
    $region47: #{tpu_custom_call.1} parent=1 // pred_check_branch
      %90 = sbr.rel (0) target = $region49
    $region48: #{tpu_custom_call.1} parent=1 // pred_region
      %91 = dma.done [#allocation5], 1024
    $region49: #{tpu_custom_call.1} parent=1 // pred_fallthru
      _
    // Predicated region
    $region50: #{tpu_custom_call.1} parent=1 // pred_check
      _
    $region51: #{tpu_custom_call.1} parent=1 // pred_check_branch
      %93 = sbr.rel (0) target = $region53
    $region52: #{tpu_custom_call.1} parent=1 // pred_region
      %94 = dma.done [#allocation8], 1024
    $region53: #{tpu_custom_call.1} parent=1 // pred_fallthru
      _
    // Predicated region
    $region54: #{tpu_custom_call.1} parent=1 // pred_check
      _
    $region55: #{tpu_custom_call.1} parent=1 // pred_check_branch
      %96 = sbr.rel (0) target = $region57
    $region56: #{tpu_custom_call.1} parent=1 // pred_region
      %97 = dma.done [#allocation8], 1024
    $region57: #{tpu_custom_call.1} parent=1 // pred_fallthru
      _
    %v99 = vld [vmem:[#allocation2] sm:$0xff]
    %v100 = vpack.c.bf16 %v99, %v99
    %v101 = vld [vmem:[#allocation4] sm:$0xf]
    %v102 = vld [vmem:[#allocation4 + $0x4] sm:$0xf]
    %v103 = vld [vmem:[#allocation4 + $0x8] sm:$0xf]
    %v104 = vld [vmem:[#allocation4 + $0xc] sm:$0xf]
    %v105 = vld [vmem:[%s2] sm:$0x1]
    %v107 = vlaneseq
    %v108 = vshrl.u32 %v107, 7
    %v109 = vsub.s32 0, %v108
    %v110 = vrot.slane %v105, %v109
    %v116 = vunpack.c.l.b16 %v101
    %v117 = vunpack.c.l.b16 %v102
    %v118 = vunpack.c.l.b16 %v103
    %v119 = vunpack.c.l.b16 %v104
    %v120 = vpack.c.b16 %v117, %v116
    %v121 = vpack.c.b16 %v119, %v118
    %vm124 = vcmask 261120
    %v126 = vsel %vm124, %v100, 0
    %128 = vmatprep.subr.bf16.mxu0 0
    %129 = vmatpush1.bf16.msra.mxu0 %v120
    %130 = vmatprep.subr.bf16.mxu0 0
    %131 = vmatpush1.bf16.msra.mxu0 %v121
    %132 = vmatprep.subr.bf16.mxu0 0
    %133 = vmatpush1.bf16.msra.mxu0 0
    %134 = vmatprep.subr.bf16.mxu0 0
    %135 = vmatpush1.bf16.msra.mxu0 0
    %136 = vmatprep.subr.bf16.mxu0 0
    %137 = vmatpush1.bf16.msra.mxu0 0
    %138 = vmatprep.subr.bf16.mxu0 0
    %139 = vmatpush1.bf16.msra.mxu0 0
    %140 = vmatprep.subr.bf16.mxu0 0
    %141 = vmatpush1.bf16.msra.mxu0 0
    %142 = vmatprep.subr.bf16.mxu0 0
    %143 = vmatpush1.bf16.msra.mxu0 0
    %144 = vmatprep.subr.bf16.mxu0 0
    %145 = vmatpush1.bf16.msra.mxu0 0
    %146 = vmatprep.subr.bf16.mxu0 0
    %147 = vmatpush1.bf16.msra.mxu0 0
    %148 = vmatprep.subr.bf16.mxu0 0
    %149 = vmatpush1.bf16.msra.mxu0 0
    %150 = vmatprep.subr.bf16.mxu0 0
    %151 = vmatpush1.bf16.msra.mxu0 0
    %152 = vmatprep.subr.bf16.mxu0 0
    %153 = vmatpush1.bf16.msra.mxu0 0
    %154 = vmatprep.subr.bf16.mxu0 0
    %155 = vmatpush1.bf16.msra.mxu0 0
    %156 = vmatprep.subr.bf16.mxu0 0
    %157 = vmatpush1.bf16.msra.mxu0 0
    %158 = vmatprep.subr.bf16.mxu0 0
    %159 = vmatpush1.bf16.msra.mxu0 0
    %160 = vmatprep.mubr.bf16.mxu0 0
    %161 = vmatmul.mubr.bf16.gmra.mrb[0].mxu0 %v126
    %v162 = vpop.f32.mrb[0].mxu0
    %v163 = vadd.f32 %v110, %v162
    %v164 = vpop.f32.mrb[0].mxu0
    %v165 = vpop.f32.mrb[0].mxu0
    %v166 = vpop.f32.mrb[0].mxu0
    %167 = vdwg.mxu0
    %v168 = vmax.f32 %v163, 0.0
    %v169 = vpack.c.bf16 %v168, %v168
    %v170 = vld [vmem:[#allocation6] sm:$0xf]
    %v171 = vld [vmem:[#allocation6 + $0x4] sm:$0xf]
    %v172 = vld [vmem:[#allocation6 + $0x8] sm:$0xf]
    %v173 = vld [vmem:[#allocation6 + $0xc] sm:$0xf]
    %v174 = vld [vmem:[#allocation6 + $0x10] sm:$0xf]
    %v175 = vld [vmem:[#allocation6 + $0x14] sm:$0xf]
    %v176 = vld [vmem:[#allocation6 + $0x18] sm:$0xf]
    %v177 = vld [vmem:[#allocation6 + $0x1c] sm:$0xf]
    %v178 = vld [vmem:[#allocation6 + $0x20] sm:$0xf]
    %v179 = vld [vmem:[#allocation6 + $0x24] sm:$0xf]
    %v180 = vld [vmem:[#allocation6 + $0x28] sm:$0xf]
    %v181 = vld [vmem:[#allocation6 + $0x2c] sm:$0xf]
    %v182 = vld [vmem:[#allocation6 + $0x30] sm:$0xf]
    %v183 = vld [vmem:[#allocation6 + $0x34] sm:$0xf]
    %v184 = vld [vmem:[#allocation6 + $0x38] sm:$0xf]
    %v185 = vld [vmem:[#allocation6 + $0x3c] sm:$0xf]
    %v186 = vld [vmem:[%s4] sm:$0x1]
    %v188 = vlaneseq
    %v189 = vshrl.u32 %v188, 7
    %v190 = vsub.s32 0, %v189
    %v191 = vrot.slane %v186, %v190
    %v209 = vunpack.c.l.b16 %v170
    %v210 = vunpack.c.l.b16 %v171
    %v211 = vunpack.c.l.b16 %v172
    %v212 = vunpack.c.l.b16 %v173
    %v213 = vunpack.c.l.b16 %v174
    %v214 = vunpack.c.l.b16 %v175
    %v215 = vunpack.c.l.b16 %v176
    %v216 = vunpack.c.l.b16 %v177
    %v217 = vunpack.c.l.b16 %v178
    %v218 = vunpack.c.l.b16 %v179
    %v219 = vunpack.c.l.b16 %v180
    %v220 = vunpack.c.l.b16 %v181
    %v221 = vunpack.c.l.b16 %v182
    %v222 = vunpack.c.l.b16 %v183
    %v223 = vunpack.c.l.b16 %v184
    %v224 = vunpack.c.l.b16 %v185
    %v225 = vpack.c.b16 %v210, %v209
    %v226 = vpack.c.b16 %v212, %v211
    %v227 = vpack.c.b16 %v214, %v213
    %v228 = vpack.c.b16 %v216, %v215
    %v229 = vpack.c.b16 %v218, %v217
    %v230 = vpack.c.b16 %v220, %v219
    %v231 = vpack.c.b16 %v222, %v221
    %v232 = vpack.c.b16 %v224, %v223
    %241 = vmatprep.subr.bf16.mxu0 0
    %242 = vmatpush1.bf16.msra.mxu0 %v225
    %243 = vmatprep.subr.bf16.mxu0 0
    %244 = vmatpush1.bf16.msra.mxu0 %v226
    %245 = vmatprep.subr.bf16.mxu0 0
    %246 = vmatpush1.bf16.msra.mxu0 %v227
    %247 = vmatprep.subr.bf16.mxu0 0
    %248 = vmatpush1.bf16.msra.mxu0 %v228
    %249 = vmatprep.subr.bf16.mxu0 0
    %250 = vmatpush1.bf16.msra.mxu0 %v229
    %251 = vmatprep.subr.bf16.mxu0 0
    %252 = vmatpush1.bf16.msra.mxu0 %v230
    %253 = vmatprep.subr.bf16.mxu0 0
    %254 = vmatpush1.bf16.msra.mxu0 %v231
    %255 = vmatprep.subr.bf16.mxu0 0
    %256 = vmatpush1.bf16.msra.mxu0 %v232
    %257 = vmatprep.subr.bf16.mxu0 0
    %258 = vmatpush1.bf16.msra.mxu0 0
    %259 = vmatprep.subr.bf16.mxu0 0
    %260 = vmatpush1.bf16.msra.mxu0 0
    %261 = vmatprep.subr.bf16.mxu0 0
    %262 = vmatpush1.bf16.msra.mxu0 0
    %263 = vmatprep.subr.bf16.mxu0 0
    %264 = vmatpush1.bf16.msra.mxu0 0
    %265 = vmatprep.subr.bf16.mxu0 0
    %266 = vmatpush1.bf16.msra.mxu0 0
    %267 = vmatprep.subr.bf16.mxu0 0
    %268 = vmatpush1.bf16.msra.mxu0 0
    %269 = vmatprep.subr.bf16.mxu0 0
    %270 = vmatpush1.bf16.msra.mxu0 0
    %271 = vmatprep.subr.bf16.mxu0 0
    %272 = vmatpush1.bf16.msra.mxu0 0
    %273 = vmatprep.mubr.bf16.mxu0 0
    %274 = vmatmul.mubr.bf16.gmra.mrb[0].mxu0 %v169
    %v275 = vpop.f32.mrb[0].mxu0
    %v276 = vadd.f32 %v191, %v275
    %v277 = vpop.f32.mrb[0].mxu0
    %v278 = vpop.f32.mrb[0].mxu0
    %v279 = vpop.f32.mrb[0].mxu0
    %280 = vdwg.mxu0
    %v281 = vmax.f32 %v276, 0.0
    %v282 = vpack.c.bf16 %v281, %v281
    %v283 = vld [vmem:[#allocation7] sm:$0xf]
    %v284 = vld [vmem:[#allocation7 + $0x4] sm:$0xf]
    %v285 = vld [vmem:[#allocation7 + $0x8] sm:$0xf]
    %v286 = vld [vmem:[#allocation7 + $0xc] sm:$0xf]
    %v287 = vld [vmem:[#allocation7 + $0x10] sm:$0xf]
    %v288 = vld [vmem:[#allocation7 + $0x14] sm:$0xf]
    %v289 = vld [vmem:[#allocation7 + $0x18] sm:$0xf]
    %v290 = vld [vmem:[#allocation7 + $0x1c] sm:$0xf]
    %v291 = vld [vmem:[#allocation7 + $0x20] sm:$0xf]
    %v292 = vld [vmem:[#allocation7 + $0x24] sm:$0xf]
    %v293 = vld [vmem:[#allocation7 + $0x28] sm:$0xf]
    %v294 = vld [vmem:[#allocation7 + $0x2c] sm:$0xf]
    %v295 = vld [vmem:[#allocation7 + $0x30] sm:$0xf]
    %v296 = vld [vmem:[#allocation7 + $0x34] sm:$0xf]
    %v297 = vld [vmem:[#allocation7 + $0x38] sm:$0xf]
    %v298 = vld [vmem:[#allocation7 + $0x3c] sm:$0xf]
    %v299 = vld [vmem:[%s6] sm:$0x1]
    %v301 = vlaneseq
    %v302 = vshrl.u32 %v301, 7
    %v303 = vsub.s32 0, %v302
    %v304 = vrot.slane %v299, %v303
    %v322 = vunpack.c.l.b16 %v283
    %v323 = vunpack.c.l.b16 %v284
    %v324 = vunpack.c.l.b16 %v285
    %v325 = vunpack.c.l.b16 %v286
    %v326 = vunpack.c.l.b16 %v287
    %v327 = vunpack.c.l.b16 %v288
    %v328 = vunpack.c.l.b16 %v289
    %v329 = vunpack.c.l.b16 %v290
    %v330 = vunpack.c.l.b16 %v291
    %v331 = vunpack.c.l.b16 %v292
    %v332 = vunpack.c.l.b16 %v293
    %v333 = vunpack.c.l.b16 %v294
    %v334 = vunpack.c.l.b16 %v295
    %v335 = vunpack.c.l.b16 %v296
    %v336 = vunpack.c.l.b16 %v297
    %v337 = vunpack.c.l.b16 %v298
    %v338 = vpack.c.b16 %v323, %v322
    %v339 = vpack.c.b16 %v325, %v324
    %v340 = vpack.c.b16 %v327, %v326
    %v341 = vpack.c.b16 %v329, %v328
    %v342 = vpack.c.b16 %v331, %v330
    %v343 = vpack.c.b16 %v333, %v332
    %v344 = vpack.c.b16 %v335, %v334
    %v345 = vpack.c.b16 %v337, %v336
    %354 = vmatprep.subr.bf16.mxu0 0
    %355 = vmatpush1.bf16.msra.mxu0 %v338
    %356 = vmatprep.subr.bf16.mxu0 0
    %357 = vmatpush1.bf16.msra.mxu0 %v339
    %358 = vmatprep.subr.bf16.mxu0 0
    %359 = vmatpush1.bf16.msra.mxu0 %v340
    %360 = vmatprep.subr.bf16.mxu0 0
    %361 = vmatpush1.bf16.msra.mxu0 %v341
    %362 = vmatprep.subr.bf16.mxu0 0
    %363 = vmatpush1.bf16.msra.mxu0 %v342
    %364 = vmatprep.subr.bf16.mxu0 0
    %365 = vmatpush1.bf16.msra.mxu0 %v343
    %366 = vmatprep.subr.bf16.mxu0 0
    %367 = vmatpush1.bf16.msra.mxu0 %v344
    %368 = vmatprep.subr.bf16.mxu0 0
    %369 = vmatpush1.bf16.msra.mxu0 %v345
    %370 = vmatprep.subr.bf16.mxu0 0
    %371 = vmatpush1.bf16.msra.mxu0 0
    %372 = vmatprep.subr.bf16.mxu0 0
    %373 = vmatpush1.bf16.msra.mxu0 0
    %374 = vmatprep.subr.bf16.mxu0 0
    %375 = vmatpush1.bf16.msra.mxu0 0
    %376 = vmatprep.subr.bf16.mxu0 0
    %377 = vmatpush1.bf16.msra.mxu0 0
    %378 = vmatprep.subr.bf16.mxu0 0
    %379 = vmatpush1.bf16.msra.mxu0 0
    %380 = vmatprep.subr.bf16.mxu0 0
    %381 = vmatpush1.bf16.msra.mxu0 0
    %382 = vmatprep.subr.bf16.mxu0 0
    %383 = vmatpush1.bf16.msra.mxu0 0
    %384 = vmatprep.subr.bf16.mxu0 0
    %385 = vmatpush1.bf16.msra.mxu0 0
    %386 = vmatprep.mubr.bf16.mxu0 0
    %387 = vmatmul.mubr.bf16.gmra.mrb[0].mxu0 %v282
    %v388 = vpop.f32.mrb[0].mxu0
    %v389 = vadd.f32 %v304, %v388
    %v390 = vpop.f32.mrb[0].mxu0
    %v391 = vpop.f32.mrb[0].mxu0
    %v392 = vpop.f32.mrb[0].mxu0
    %393 = vdwg.mxu0
    %v394 = vmax.f32 %v389, 0.0
    %v395 = vpack.c.bf16 %v394, %v394
    %v396 = vld [vmem:[#allocation9] sm:$0xf]
    %v397 = vld [vmem:[#allocation9 + $0x4] sm:$0xf]
    %v398 = vld [vmem:[#allocation9 + $0x8] sm:$0xf]
    %v399 = vld [vmem:[#allocation9 + $0xc] sm:$0xf]
    %v400 = vld [vmem:[#allocation9 + $0x10] sm:$0xf]
    %v401 = vld [vmem:[#allocation9 + $0x14] sm:$0xf]
    %v402 = vld [vmem:[#allocation9 + $0x18] sm:$0xf]
    %v403 = vld [vmem:[#allocation9 + $0x1c] sm:$0xf]
    %v404 = vld [vmem:[#allocation9 + $0x20] sm:$0xf]
    %v405 = vld [vmem:[#allocation9 + $0x24] sm:$0xf]
    %v406 = vld [vmem:[#allocation9 + $0x28] sm:$0xf]
    %v407 = vld [vmem:[#allocation9 + $0x2c] sm:$0xf]
    %v408 = vld [vmem:[#allocation9 + $0x30] sm:$0xf]
    %v409 = vld [vmem:[#allocation9 + $0x34] sm:$0xf]
    %v410 = vld [vmem:[#allocation9 + $0x38] sm:$0xf]
    %v411 = vld [vmem:[#allocation9 + $0x3c] sm:$0xf]
    %v412 = vld [vmem:[%s8] sm:$0x1]
    %v414 = vlaneseq
    %v415 = vshrl.u32 %v414, 7
    %v416 = vsub.s32 0, %v415
    %v417 = vrot.slane %v412, %v416
    %v435 = vunpack.c.l.b16 %v396
    %v436 = vunpack.c.l.b16 %v397
    %v437 = vunpack.c.l.b16 %v398
    %v438 = vunpack.c.l.b16 %v399
    %v439 = vunpack.c.l.b16 %v400
    %v440 = vunpack.c.l.b16 %v401
    %v441 = vunpack.c.l.b16 %v402
    %v442 = vunpack.c.l.b16 %v403
    %v443 = vunpack.c.l.b16 %v404
    %v444 = vunpack.c.l.b16 %v405
    %v445 = vunpack.c.l.b16 %v406
    %v446 = vunpack.c.l.b16 %v407
    %v447 = vunpack.c.l.b16 %v408
    %v448 = vunpack.c.l.b16 %v409
    %v449 = vunpack.c.l.b16 %v410
    %v450 = vunpack.c.l.b16 %v411
    %v451 = vpack.c.b16 %v436, %v435
    %v452 = vpack.c.b16 %v438, %v437
    %v453 = vpack.c.b16 %v440, %v439
    %v454 = vpack.c.b16 %v442, %v441
    %v455 = vpack.c.b16 %v444, %v443
    %v456 = vpack.c.b16 %v446, %v445
    %v457 = vpack.c.b16 %v448, %v447
    %v458 = vpack.c.b16 %v450, %v449
    %467 = vmatprep.subr.bf16.mxu0 0
    %468 = vmatpush1.bf16.msra.mxu0 %v451
    %469 = vmatprep.subr.bf16.mxu0 0
    %470 = vmatpush1.bf16.msra.mxu0 %v452
    %471 = vmatprep.subr.bf16.mxu0 0
    %472 = vmatpush1.bf16.msra.mxu0 %v453
    %473 = vmatprep.subr.bf16.mxu0 0
    %474 = vmatpush1.bf16.msra.mxu0 %v454
    %475 = vmatprep.subr.bf16.mxu0 0
    %476 = vmatpush1.bf16.msra.mxu0 %v455
    %477 = vmatprep.subr.bf16.mxu0 0
    %478 = vmatpush1.bf16.msra.mxu0 %v456
    %479 = vmatprep.subr.bf16.mxu0 0
    %480 = vmatpush1.bf16.msra.mxu0 %v457
    %481 = vmatprep.subr.bf16.mxu0 0
    %482 = vmatpush1.bf16.msra.mxu0 %v458
    %483 = vmatprep.subr.bf16.mxu0 0
    %484 = vmatpush1.bf16.msra.mxu0 0
    %485 = vmatprep.subr.bf16.mxu0 0
    %486 = vmatpush1.bf16.msra.mxu0 0
    %487 = vmatprep.subr.bf16.mxu0 0
    %488 = vmatpush1.bf16.msra.mxu0 0
    %489 = vmatprep.subr.bf16.mxu0 0
    %490 = vmatpush1.bf16.msra.mxu0 0
    %491 = vmatprep.subr.bf16.mxu0 0
    %492 = vmatpush1.bf16.msra.mxu0 0
    %493 = vmatprep.subr.bf16.mxu0 0
    %494 = vmatpush1.bf16.msra.mxu0 0
    %495 = vmatprep.subr.bf16.mxu0 0
    %496 = vmatpush1.bf16.msra.mxu0 0
    %497 = vmatprep.subr.bf16.mxu0 0
    %498 = vmatpush1.bf16.msra.mxu0 0
    %499 = vmatprep.mubr.bf16.mxu0 0
    %500 = vmatmul.mubr.bf16.gmra.mrb[0].mxu0 %v395
    %v501 = vpop.f32.mrb[0].mxu0
    %v502 = vadd.f32 %v417, %v501
    %v503 = vpop.f32.mrb[0].mxu0
    %v504 = vpop.f32.mrb[0].mxu0
    %v505 = vpop.f32.mrb[0].mxu0
    %506 = vdwg.mxu0
    %507 = vmax.xlane.f32.xlu0 %v502
    %v508 = vpop.xlane.xlu0 %507
    %v509 = vsub.f32 %v502, %v508
    %v510 = vmul.f32 %v509, 1.442695
    %v511 = vpow.pop %v510
    %512 = vadd.xlane.f32.xlu0 %v511
    %v513 = vpop.xlane.xlu0 %512
    %v514 = vrcp.pop %v513
    %v515 = vmul.f32 %v511, %v514
    %v516 = vmax.f32 %v515, 1e-06
    %v517 = vmin.f32 %v516, 0.999999
    %vm518 = vcmask 31744
    %519 = vst.msk [vmem:[%s9] sm:$0xff] %vm518, %v517
    // Predicated region
    $region58: #{tpu_custom_call.1} parent=1 // pred_check
      _
    $region59: #{tpu_custom_call.1} parent=1 // pred_check_branch
      %521 = sbr.rel (0) target = $region61
    $region60: #{tpu_custom_call.1} parent=1 // pred_region
      _
    $region61: #{tpu_custom_call.1} parent=1 // pred_fallthru
      _
    // Predicated region
    $region62: #{tpu_custom_call.1} parent=1 // pred_check
      _
    $region63: #{tpu_custom_call.1} parent=1 // pred_check_branch
      %523 = sbr.rel (0) target = $region65
    $region64: #{tpu_custom_call.1} parent=1 // pred_region
      _
    $region65: #{tpu_custom_call.1} parent=1 // pred_fallthru
      _
    %524 = vsyncpa [#allocation3], 1
    %525 = vsyncpa [#allocation5], 1
    %526 = vsyncpa [#allocation8], 1

</llo_original>
